<compile_context>
chip_gen: v7x
topology: tpu7x:2x2x1
jax: 0.10.0
libtpu: 0.0.40
codegen_flags: <defaults>
</compile_context>

<pallas_src>
import jax
import jax.numpy as jnp
from jax.experimental import pallas as pl
from jax.experimental.pallas import tpu as pltpu


def _round_up(n, m):
    return ((n + m - 1) // m) * m


# ----------------------------------------------------------------------------
# Kernel: fused LayerNorm -> 1x1 conv (matmul) -> PReLU on one (b, time-tile).
# ----------------------------------------------------------------------------
def _bottleneck_kernel(x_ref, w_ref, b_ref, alpha_ref, o_ref):
    """x_ref:     (C_in, tile_T)   channels on sublanes, time on lanes
       w_ref:     (C_out, C_in)    conv weight with LN affine folded in
       b_ref:     (C_out, 1)       conv bias with LN affine folded in
       alpha_ref: (C_out, 1)       per-output-channel PReLU slope
       o_ref:     (C_out, tile_T)
    """
    x = x_ref[...].astype(jnp.float32)

    # LayerNorm over channels (sublane axis), two-pass centered variance.
    mu = jnp.mean(x, axis=0, keepdims=True)                   # (1, tile_T)
    xc = x - mu
    var = jnp.mean(xc * xc, axis=0, keepdims=True)            # (1, tile_T)
    h = xc * jax.lax.rsqrt(var + 1e-5)                        # (C_in, tile_T)

    # 1x1 conv == channel matmul per time column (MXU, f32 accumulation).
    y = jnp.dot(w_ref[...], h, preferred_element_type=jnp.float32) + b_ref[...]

    # PReLU with per-output-channel slope.
    o_ref[...] = jnp.where(y >= 0.0, y, alpha_ref[...] * y).astype(o_ref.dtype)


# ----------------------------------------------------------------------------
# Wrapper: weight folding + tile selection + pallas_call (no layout copies).
# ----------------------------------------------------------------------------
def _pick_time_tile(B, T, C_in, C_out):
    # Double-buffered x + out blocks must fit under the smallest default
    # scoped-VMEM limit (16 MiB on v5e; also fine for v6e/v7x 32 MiB defaults).
    budget = 12 * 1024 * 1024
    bytes_per_col = 2 * (C_in + C_out) * 4                    # 2x = double buffering, f32
    max_cols = max(128, (budget // bytes_per_col) // 128 * 128)
    tile = T if T <= max_cols else max_cols                   # full T or lane-aligned slab
    # Keep the grid at >= 2 steps so the second TensorCore (v7x megacore) has work.
    if B == 1 and tile == T and T >= 256:
        tile = min(T, _round_up(pl.cdiv(T, 2), 128))
    return tile


@jax.jit
def bottleneck_forward(x, ln_w, ln_b, conv_w, conv_b, prelu_w):
    """x: (B, C_in, T) float32 -> (B, C_out, T) float32."""
    B, C_in, T = x.shape
    if conv_w.ndim == 3:                                      # PyTorch Conv1d weight (C_out, C_in, 1)
        conv_w = conv_w[..., 0]
    C_out = conv_w.shape[0]

    # Fold LayerNorm affine into the 1x1 conv (done once at trace time):
    #   conv_w @ (n * ln_w + ln_b) + conv_b = (conv_w * ln_w) @ n + (conv_w @ ln_b + conv_b)
    w_fold = (conv_w * ln_w[None, :]).astype(jnp.float32)     # (C_out, C_in)
    b_fold = (conv_w @ ln_b + conv_b).reshape(C_out, 1).astype(jnp.float32)
    alpha = prelu_w.reshape(C_out, 1).astype(jnp.float32)

    tile_t = _pick_time_tile(B, T, C_in, C_out)
    grid = (B, pl.cdiv(T, tile_t))                            # ragged last T block handled by Pallas

    return pl.pallas_call(
        _bottleneck_kernel,
        out_shape=jax.ShapeDtypeStruct((B, C_out, T), x.dtype),
        grid=grid,
        in_specs=[
            pl.BlockSpec((None, C_in, tile_t), lambda b, t: (b, 0, t)),   # activation tile
            pl.BlockSpec((C_out, C_in), lambda b, t: (0, 0)),             # folded conv weight (resident)
            pl.BlockSpec((C_out, 1), lambda b, t: (0, 0)),                # folded bias
            pl.BlockSpec((C_out, 1), lambda b, t: (0, 0)),                # PReLU slope
        ],
        out_specs=pl.BlockSpec((None, C_out, tile_t), lambda b, t: (b, 0, t)),
        compiler_params=pltpu.CompilerParams(
            dimension_semantics=("parallel", "parallel")),                # megacore on v7x
    )(x, w_fold, b_fold, alpha)


# ----------------------------------------------------------------------------
# Pure-JAX reference (mirrors the PyTorch forward exactly).
# ----------------------------------------------------------------------------
def bottleneck_ref(x, ln_w, ln_b, conv_w, conv_b, prelu_w):
    h = jnp.moveaxis(x, 1, 2)                                  # (B, T, C_in)
    mu = jnp.mean(h, axis=-1, keepdims=True)
    var = jnp.mean((h - mu) ** 2, axis=-1, keepdims=True)
    h = (h - mu) / jnp.sqrt(var + 1e-5) * ln_w + ln_b
    w = conv_w[..., 0] if conv_w.ndim == 3 else conv_w
    y = jnp.einsum('btc,oc->bot', h, w) + conv_b[None, :, None]
    return jnp.where(y >= 0.0, y, prelu_w[None, :, None] * y)


# ----------------------------------------------------------------------------
if __name__ == "__main__":
    B, C_IN, T = 2, 32, 16
    C_OUT = 16

    key = jax.random.PRNGKey(0)
    k_x, k_w, k_b, k_lw, k_lb = jax.random.split(key, 5)

    x = jax.random.normal(k_x, (B, C_IN, T), jnp.float32)
    ln_w = 1.0 + 0.1 * jax.random.normal(k_lw, (C_IN,), jnp.float32)       # non-trivial affine
    ln_b = 0.05 * jax.random.normal(k_lb, (C_IN,), jnp.float32)
    conv_w = jax.random.normal(k_w, (C_OUT, C_IN, 1), jnp.float32) * 0.1   # Conv1d(k=1) weight
    conv_b = jax.random.normal(k_b, (C_OUT,), jnp.float32) * 0.02
    prelu_w = jnp.full((C_OUT,), 0.25, jnp.float32)                        # PReLU default init

    out = jax.block_until_ready(
        bottleneck_forward(x, ln_w, ln_b, conv_w, conv_b, prelu_w))
    ref = bottleneck_ref(x, ln_w, ln_b, conv_w, conv_b, prelu_w)

    assert out.shape == (B, C_OUT, T) and out.dtype == jnp.float32
    assert bool(jnp.all(jnp.isfinite(out)))
    assert bool(jnp.allclose(out, ref, atol=1e-4, rtol=1e-4))
    print("KERNEL_OK")
</pallas_src>

<mosaic_0001>
module attributes {stable_mosaic.version = 11 : i64} {
  func.func @_bottleneck_kernel(%arg0: i32, %arg1: i32, %arg2: memref<1x32x16xf32, #tpu.memory_space<vmem>>, %arg3: memref<16x32xf32, #tpu.memory_space<vmem>>, %arg4: memref<16x1xf32, #tpu.memory_space<vmem>>, %arg5: memref<16x1xf32, #tpu.memory_space<vmem>>, %arg6: memref<1x16x16xf32, #tpu.memory_space<vmem>>) attributes {dimension_semantics = [#tpu.dimension_semantics<parallel>, #tpu.dimension_semantics<parallel>], iteration_bounds = array<i64: 2, 1>, scalar_prefetch = 0 : i64, scratch_operands = 0 : i64, tpu.core_type = #tpu.core_type<tc>, window_params = [{transform_indices = @transform_0, window_bounds = array<i64: 1, 32, 16>}, {pipeline_mode = #tpu.pipeline_mode<synchronous>, transform_indices = @transform_1, window_bounds = array<i64: 16, 32>}, {pipeline_mode = #tpu.pipeline_mode<synchronous>, transform_indices = @transform_2, window_bounds = array<i64: 16, 1>}, {pipeline_mode = #tpu.pipeline_mode<synchronous>, transform_indices = @transform_3, window_bounds = array<i64: 16, 1>}, {transform_indices = @transform_4, window_bounds = array<i64: 1, 16, 16>}]} {
    %c0 = arith.constant 0 : index
    %c0_0 = arith.constant 0 : index
    %c0_1 = arith.constant 0 : index
    %0 = vector.load %arg2[%c0, %c0_0, %c0_1] : memref<1x32x16xf32, #tpu.memory_space<vmem>>, vector<1x32x16xf32>
    %1 = vector.shape_cast %0 : vector<1x32x16xf32> to vector<32x16xf32>
    %cst = arith.constant dense<0.000000e+00> : vector<16xf32>
    %2 = vector.multi_reduction <add>, %1, %cst [0] : vector<32x16xf32> to vector<16xf32>
    %3 = vector.shape_cast %2 : vector<16xf32> to vector<1x16xf32>
    %cst_2 = arith.constant 3.200000e+01 : f32
    %4 = vector.broadcast %cst_2 : f32 to vector<1x16xf32>
    %5 = arith.divf %3, %4 : vector<1x16xf32>
    %6 = vector.broadcast %5 : vector<1x16xf32> to vector<32x16xf32>
    %7 = arith.subf %1, %6 : vector<32x16xf32>
    %8 = arith.mulf %7, %7 : vector<32x16xf32>
    %cst_3 = arith.constant dense<0.000000e+00> : vector<16xf32>
    %9 = vector.multi_reduction <add>, %8, %cst_3 [0] : vector<32x16xf32> to vector<16xf32>
    %10 = vector.shape_cast %9 : vector<16xf32> to vector<1x16xf32>
    %cst_4 = arith.constant 3.200000e+01 : f32
    %11 = vector.broadcast %cst_4 : f32 to vector<1x16xf32>
    %12 = arith.divf %10, %11 : vector<1x16xf32>
    %cst_5 = arith.constant 9.99999974E-6 : f32
    %13 = vector.broadcast %cst_5 : f32 to vector<1x16xf32>
    %14 = arith.addf %12, %13 : vector<1x16xf32>
    %15 = math.rsqrt %14 : vector<1x16xf32>
    %16 = vector.broadcast %15 : vector<1x16xf32> to vector<32x16xf32>
    %17 = arith.mulf %7, %16 : vector<32x16xf32>
    %c0_6 = arith.constant 0 : index
    %c0_7 = arith.constant 0 : index
    %18 = vector.load %arg3[%c0_6, %c0_7] : memref<16x32xf32, #tpu.memory_space<vmem>>, vector<16x32xf32>
    %cst_8 = arith.constant dense<0.000000e+00> : vector<16x16xf32>
    %19 = tpu.matmul %18, %17, %cst_8 {dimension_numbers = #tpu.dot_dimension_numbers<[1], [0], [0], [1], [0, 0, 1, 1], [], []>} : vector<16x32xf32>, vector<32x16xf32>, vector<16x16xf32> -> vector<16x16xf32>
    %c0_9 = arith.constant 0 : index
    %c0_10 = arith.constant 0 : index
    %20 = vector.load %arg4[%c0_9, %c0_10] : memref<16x1xf32, #tpu.memory_space<vmem>>, vector<16x1xf32>
    %21 = vector.broadcast %20 : vector<16x1xf32> to vector<16x16xf32>
    %22 = arith.addf %19, %21 : vector<16x16xf32>
    %cst_11 = arith.constant 0.000000e+00 : f32
    %23 = vector.broadcast %cst_11 : f32 to vector<16x16xf32>
    %24 = arith.cmpf oge, %22, %23 : vector<16x16xf32>
    %c0_12 = arith.constant 0 : index
    %c0_13 = arith.constant 0 : index
    %25 = vector.load %arg5[%c0_12, %c0_13] : memref<16x1xf32, #tpu.memory_space<vmem>>, vector<16x1xf32>
    %26 = vector.broadcast %25 : vector<16x1xf32> to vector<16x16xf32>
    %27 = arith.mulf %26, %22 : vector<16x16xf32>
    %28 = arith.select %24, %22, %27 : vector<16x16xi1>, vector<16x16xf32>
    %c0_14 = arith.constant 0 : index
    %c0_15 = arith.constant 0 : index
    %c0_16 = arith.constant 0 : index
    %29 = vector.load %arg6[%c0_14, %c0_15, %c0_16] : memref<1x16x16xf32, #tpu.memory_space<vmem>>, vector<1x16x16xf32>
    %30 = vector.shape_cast %29 : vector<1x16x16xf32> to vector<16x16xf32>
    %31 = vector.shape_cast %28 : vector<16x16xf32> to vector<1x16x16xf32>
    tpu.vector_store %arg6[%c0_14, %c0_15, %c0_16], %31 {strides = array<i32>} : memref<1x16x16xf32, #tpu.memory_space<vmem>>, vector<1x16x16xf32>,
    return
  }
  func.func @transform_0(%arg0: i32, %arg1: i32) -> (i32, i32, i32) {
    %c0_i32 = arith.constant 0 : i32
    %c0_i32_0 = arith.constant 0 : i32
    return %arg0, %c0_i32, %arg1 : i32, i32, i32
  }
  func.func @transform_1(%arg0: i32, %arg1: i32) -> (i32, i32) {
    %c0_i32 = arith.constant 0 : i32
    %c0_i32_0 = arith.constant 0 : i32
    %c0_i32_1 = arith.constant 0 : i32
    return %c0_i32, %c0_i32_0 : i32, i32
  }
  func.func @transform_2(%arg0: i32, %arg1: i32) -> (i32, i32) {
    %c0_i32 = arith.constant 0 : i32
    %c0_i32_0 = arith.constant 0 : i32
    %c0_i32_1 = arith.constant 0 : i32
    return %c0_i32, %c0_i32_0 : i32, i32
  }
  func.func @transform_3(%arg0: i32, %arg1: i32) -> (i32, i32) {
    %c0_i32 = arith.constant 0 : i32
    %c0_i32_0 = arith.constant 0 : i32
    %c0_i32_1 = arith.constant 0 : i32
    return %c0_i32, %c0_i32_0 : i32, i32
  }
  func.func @transform_4(%arg0: i32, %arg1: i32) -> (i32, i32, i32) {
    %c0_i32 = arith.constant 0 : i32
    %c0_i32_0 = arith.constant 0 : i32
    return %arg0, %c0_i32, %arg1 : i32, i32, i32
  }
}

</mosaic_0001>

<llo_original>
// kernel: bottleneck_forward.1
$region0: #{bottleneck_forward.1}
  #allocation0 [shape = 'u32[]', space=smem, size = 0x4, offset = 0x4, fixed_abs, tag = 'smem constant byte address 0x4 - core index']
  #allocation1 [shape = 'u32[144,128]{1,0:T(1,128)}', space=vmem, size = 0x12000, scoped, tag = 'internal scratch']
  %s0 = inlined_call_operand.vmem [shape: f32[2,32,16], index: 0, kind: input, shape index: {}]
  %s1 = inlined_call_operand.vmem [shape: f32[16,32], index: 1, kind: input, shape index: {}]
  %s2 = inlined_call_operand.vmem [shape: f32[16,1], index: 2, kind: input, shape index: {}]
  %s3 = inlined_call_operand.vmem [shape: f32[16,1], index: 3, kind: input, shape index: {}]
  %s4 = inlined_call_operand.hbm [shape: f32[2,16,16], index: 4, kind: output, shape index: {}]
  %s5 = sld [smem:[#allocation0]]
  $region49: #{bottleneck_forward.1} parent=0
    _
  %s7 = ssub.s32 1, %s5
  %s8 = scalar_select 0, %s7, %s5
  $region1: #{bottleneck_forward.1} parent=0
    #allocation2 [shape = 'u8[16384]{0}', space=vmem, size = 0x4000, scoped, tag = 'output window, operand 0']
    #allocation3 [shape = 's32[2]{0}', space=sflag, size = 0x8, scoped, tag = 'scoped memory for bottleneck_forward.1']
    %9 = vsyncpa [#allocation3], 0
    %s10 = scalar_lea.sflag [#allocation3], 1
    %11 = vsyncpa %s10, 0
    loop: start=0, step=1, limit=4
    $region2: #{bottleneck_forward.1} parent=1 // loop_pre_header
      _
    $region3: #{bottleneck_forward.1} parent=1 // loop_header
      %s13 = sphi 0, %s17
      %p14 = scmp.ge.s32.totalorder %s13, 4
      %s20 = sphi 0, %s32
      %s21 = sphi 0, %s28
      %s22 = sphi 0, %s20
      %s23 = sphi 0, %s21
      %s24 = sphi 0, %s22
      %s25 = sphi 0, %s23
      %s37 = sphi 0, %s39
      %s40 = sphi 0, %s37
      %s41 = sphi 0, %s40
      %s57 = sphi 0, %s41
      %s61 = sphi 0, %s61
      %s63 = sphi 0, %s61
      %s64 = sphi 0, %s63
      %s78 = sphi 0, %s64
      %s82 = sphi 0, %s82
      %s84 = sphi 0, %s82
      %s85 = sphi 0, %s84
      %s99 = sphi 0, %s85
      %s103 = sphi 0, %s103
      %s105 = sphi 0, %s103
      %s106 = sphi 0, %s105
      %s120 = sphi 0, %s106
      %s128 = sphi 0, %s130
      %s131 = sphi 0, %s128
      %s132 = sphi 0, %s131
      %s148 = sphi 0, %s132
    $region4: #{bottleneck_forward.1} parent=1 // loop_header_branch
      %16 = sbr.rel (%p14) target = $region8
    $region5: #{bottleneck_forward.1} parent=1 // loop_body
      %s18 = ssub.s32 %s13, 1
      %s19 = ssub.s32 %s13, 2
      %s26 = sadd.s32 1, %s21
      %p27 = scmp.ge.s32.totalorder %s26, 1
      %s28 = scalar_select %p27, 0, %s26
      %s29 = sadd.s32 1, %s20
      %s30 = scalar_select %p27, %s29, %s20
      %p31 = scmp.ge.s32.totalorder %s30, 2
      %s32 = scalar_select %p31, 0, %s30
      %s33 = ssub.s32 %s20, %s32
      %s34 = ssub.s32 %s21, %s28
      %s35 = sor.u32 %s33, %s34
      %p36 = scmp.eq.s32.totalorder %s35, 0
      %s38 = sadd.s32 %s37, 1
      %s39 = scalar_select %p36, %s37, %s38
      %p42 = pneg %p36
      %p43 = scmp.eq.s32.totalorder %s13, 1
      %p44 = por %p42, %p43
      %p45 = scmp.ne.s32.totalorder %s37, %s40
      %p46 = scmp.eq.s32.totalorder %s13, 0
      %p47 = por %p45, %p46
      %p48 = scmp.ne.s32.totalorder %s37, %s40
      %p49 = scmp.eq.s32.totalorder %s18, 1
      %p50 = por %p48, %p49
      %p51 = scmp.ne.s32.totalorder %s40, %s41
      %p52 = scmp.eq.s32.totalorder %s18, 0
      %p53 = por %p51, %p52
      %p54 = scmp.ne.s32.totalorder %s40, %s41
      %p55 = scmp.eq.s32.totalorder %s19, 1
      %p56 = por %p54, %p55
      %p58 = scmp.ne.s32.totalorder %s41, %s57
      %p59 = scmp.eq.s32.totalorder %s19, 0
      %p60 = por %p58, %p59
      %s62 = sadd.s32 %s61, 1
      %p65 = scmp.eq.s32.totalorder %s13, 1
      %p66 = scmp.ne.s32.totalorder %s61, %s63
      %p67 = scmp.eq.s32.totalorder %s13, 0
      %p68 = por %p66, %p67
      %p69 = scmp.ne.s32.totalorder %s61, %s63
      %p70 = scmp.eq.s32.totalorder %s18, 1
      %p71 = por %p69, %p70
      %p72 = scmp.ne.s32.totalorder %s63, %s64
      %p73 = scmp.eq.s32.totalorder %s18, 0
      %p74 = por %p72, %p73
      %p75 = scmp.ne.s32.totalorder %s63, %s64
      %p76 = scmp.eq.s32.totalorder %s19, 1
      %p77 = por %p75, %p76
      %p79 = scmp.ne.s32.totalorder %s64, %s78
      %p80 = scmp.eq.s32.totalorder %s19, 0
      %p81 = por %p79, %p80
      %s83 = sadd.s32 %s82, 1
      %p86 = scmp.eq.s32.totalorder %s13, 1
      %p87 = scmp.ne.s32.totalorder %s82, %s84
      %p88 = scmp.eq.s32.totalorder %s13, 0
      %p89 = por %p87, %p88
      %p90 = scmp.ne.s32.totalorder %s82, %s84
      %p91 = scmp.eq.s32.totalorder %s18, 1
      %p92 = por %p90, %p91
      %p93 = scmp.ne.s32.totalorder %s84, %s85
      %p94 = scmp.eq.s32.totalorder %s18, 0
      %p95 = por %p93, %p94
      %p96 = scmp.ne.s32.totalorder %s84, %s85
      %p97 = scmp.eq.s32.totalorder %s19, 1
      %p98 = por %p96, %p97
      %p100 = scmp.ne.s32.totalorder %s85, %s99
      %p101 = scmp.eq.s32.totalorder %s19, 0
      %p102 = por %p100, %p101
      %s104 = sadd.s32 %s103, 1
      %p107 = scmp.eq.s32.totalorder %s13, 1
      %p108 = scmp.ne.s32.totalorder %s103, %s105
      %p109 = scmp.eq.s32.totalorder %s13, 0
      %p110 = por %p108, %p109
      %p111 = scmp.ne.s32.totalorder %s103, %s105
      %p112 = scmp.eq.s32.totalorder %s18, 1
      %p113 = por %p111, %p112
      %p114 = scmp.ne.s32.totalorder %s105, %s106
      %p115 = scmp.eq.s32.totalorder %s18, 0
      %p116 = por %p114, %p115
      %p117 = scmp.ne.s32.totalorder %s105, %s106
      %p118 = scmp.eq.s32.totalorder %s19, 1
      %p119 = por %p117, %p118
      %p121 = scmp.ne.s32.totalorder %s106, %s120
      %p122 = scmp.eq.s32.totalorder %s19, 0
      %p123 = por %p121, %p122
      %s124 = ssub.s32 %s20, %s32
      %s125 = ssub.s32 %s21, %s28
      %s126 = sor.u32 %s124, %s125
      %p127 = scmp.eq.s32.totalorder %s126, 0
      %s129 = sadd.s32 %s128, 1
      %s130 = scalar_select %p127, %s128, %s129
      %p133 = pneg %p127
      %p134 = scmp.eq.s32.totalorder %s13, 1
      %p135 = por %p133, %p134
      %p136 = scmp.ne.s32.totalorder %s128, %s131
      %p137 = scmp.eq.s32.totalorder %s13, 0
      %p138 = por %p136, %p137
      %p139 = scmp.ne.s32.totalorder %s128, %s131
      %p140 = scmp.eq.s32.totalorder %s18, 1
      %p141 = por %p139, %p140
      %p142 = scmp.ne.s32.totalorder %s131, %s132
      %p143 = scmp.eq.s32.totalorder %s18, 0
      %p144 = por %p142, %p143
      %p145 = scmp.ne.s32.totalorder %s131, %s132
      %p146 = scmp.eq.s32.totalorder %s19, 1
      %p147 = por %p145, %p146
      %p149 = scmp.ne.s32.totalorder %s132, %s148
      %p150 = scmp.eq.s32.totalorder %s19, 0
      %p151 = por %p149, %p150
      %p152 = scmp.le.s32.totalorder 1, %s13
      %p153 = scmp.lt.s32.totalorder %s13, 3
      %p154 = pnand %p152, %p153
      %p155 = pneg %p154
      // Predicated region
      $region9: #{bottleneck_forward.1} parent=5 // pred_check
        _
      $region10: #{bottleneck_forward.1} parent=5 // pred_check_branch
        %157 = sbr.rel (%p154) target = $region12
      $region11: #{bottleneck_forward.1} parent=5 // pred_region
        %s158 = ssub.s32 %s13, 1
        // Predicated region
        $region13: #{bottleneck_forward.1} parent=11 // pred_check
          %p159 = pneg %p74
        $region14: #{bottleneck_forward.1} parent=11 // pred_check_branch
          %161 = sbr.rel (%p159) target = $region16
        $region15: #{bottleneck_forward.1} parent=11 // pred_region
          _
        $region16: #{bottleneck_forward.1} parent=11 // pred_fallthru
          _
        // Predicated region
        $region17: #{bottleneck_forward.1} parent=11 // pred_check
          %p162 = pneg %p95
        $region18: #{bottleneck_forward.1} parent=11 // pred_check_branch
          %164 = sbr.rel (%p162) target = $region20
        $region19: #{bottleneck_forward.1} parent=11 // pred_region
          _
        $region20: #{bottleneck_forward.1} parent=11 // pred_fallthru
          _
        // Predicated region
        $region21: #{bottleneck_forward.1} parent=11 // pred_check
          %p165 = pneg %p116
        $region22: #{bottleneck_forward.1} parent=11 // pred_check_branch
          %167 = sbr.rel (%p165) target = $region24
        $region23: #{bottleneck_forward.1} parent=11 // pred_region
          _
        $region24: #{bottleneck_forward.1} parent=11 // pred_fallthru
          _
      $region12: #{bottleneck_forward.1} parent=5 // pred_fallthru
        _
      %p168 = scmp.lt.s32.totalorder %s13, 2
      // Predicated region
      $region25: #{bottleneck_forward.1} parent=5 // pred_check
        %p169 = pneg %p168
      $region26: #{bottleneck_forward.1} parent=5 // pred_check_branch
        %171 = sbr.rel (%p169) target = $region28
      $region27: #{bottleneck_forward.1} parent=5 // pred_region
        // Predicated region
        $region29: #{bottleneck_forward.1} parent=27 // pred_check
          %p172 = pneg %p47
        $region30: #{bottleneck_forward.1} parent=27 // pred_check_branch
          %174 = sbr.rel (%p172) target = $region32
        $region31: #{bottleneck_forward.1} parent=27 // pred_region
          %p175 = scmp.lt.s32.totalorder %s20, 1
          %s176 = scalar_select %p175, %s20, 1
          %p177 = scmp.lt.s32.totalorder %s21, 0
          %s178 = scalar_select %p177, %s21, 0
          %s179 = smul.addr %s176, 4
          %s180 = sadd.s32 %s178, %s179
          %s181 = smul.addr %s180, 8
          %s182 = scalar_lea.vmem %s0, %s181
        $region32: #{bottleneck_forward.1} parent=27 // pred_fallthru
          _
      $region28: #{bottleneck_forward.1} parent=5 // pred_fallthru
        _
      %p183 = scmp.le.s32.totalorder 1, %s13
      %p184 = scmp.lt.s32.totalorder %s13, 3
      %p185 = pnand %p183, %p184
      %p186 = pneg %p185
      // Predicated region
      $region33: #{bottleneck_forward.1} parent=5 // pred_check
        _
      $region34: #{bottleneck_forward.1} parent=5 // pred_check_branch
        %188 = sbr.rel (%p185) target = $region36
      $region35: #{bottleneck_forward.1} parent=5 // pred_region
        %s189 = ssub.s32 %s13, 1
        %p190 = scmp.lt.s32.totalorder %s22, 1
        %s191 = scalar_select %p190, %s22, 1
        %p192 = scmp.lt.s32.totalorder %s23, 0
        %s193 = scalar_select %p192, %s23, 0
        %s194 = smul.addr %s191, 4
        %s195 = sadd.s32 %s193, %s194
        %s196 = smul.addr %s195, 8
        %s197 = scalar_lea.vmem %s0, %s196
        %p198 = pneg %p53
        %p199 = pneg %p50
        %p200 = pneg %p74
        %p201 = pneg %p71
        %p202 = pneg %p95
        %p203 = pneg %p92
        %p204 = pneg %p116
        %p205 = pneg %p113
        %p206 = pneg %p144
        %p207 = pneg %p141
        %s208 = sand.u32 %s131, 1
        %s209 = scalar_lea.sflag [#allocation3], %s208
        %s210 = sand.u32 %s131, 1
        %s211 = smul.addr %s210, 16
        %s212 = scalar_lea.vmem [#allocation2], %s211
        %p213 = scmp.lt.s32.totalorder %s22, 1
        %s214 = scalar_select %p213, %s22, 1
        %p215 = scmp.lt.s32.totalorder %s23, 0
        %s216 = scalar_select %p215, %s23, 0
        %s217 = smul.addr %s214, 4
        %s218 = sadd.s32 %s216, %s217
        %s219 = smul.addr %s218, 8
        %s220 = scalar_lea.vmem %s0, %s219
        %v221 = vld [vmem:[%s220] sm:$0xff]
        %v222 = vld [vmem:[%s220 + $0x8] sm:$0xff]
        %v223 = vld [vmem:[%s220 + $0x10] sm:$0xff]
        %v224 = vld [vmem:[%s220 + $0x18] sm:$0xff]
        %vm225 = vcmask 130048
        %v226 = vsel %vm225, %v221, 0.0
        %v227 = vsel %vm225, %v222, 0.0
        %v228 = vadd.f32 %v226, %v227
        %v229 = vsel %vm225, %v223, 0.0
        %v230 = vadd.f32 %v228, %v229
        %v231 = vsel %vm225, %v224, 0.0
        %v232 = vadd.f32 %v230, %v231
        %v233 = vrot.slane %v232, 4
        %v234 = vadd.f32 %v232, %v233
        %v235 = vrot.slane %v234, 2
        %v236 = vadd.f32 %v234, %v235
        %v237 = vrot.slane %v236, 1
        %v238 = vadd.f32 %v236, %v237
        %v239 = vrcp.pop 32.0
        %v240 = vmul.f32 %v238, %v239
        %v241 = vsub.f32 %v221, %v240
        %v242 = vsub.f32 %v222, %v240
        %v243 = vsub.f32 %v223, %v240
        %v244 = vsub.f32 %v224, %v240
        %v245 = vmul.f32 %v241, %v241
        %v246 = vmul.f32 %v242, %v242
        %v247 = vmul.f32 %v243, %v243
        %v248 = vmul.f32 %v244, %v244
        %v249 = vsel %vm225, %v245, 0.0
        %v250 = vsel %vm225, %v246, 0.0
        %v251 = vadd.f32 %v249, %v250
        %v252 = vsel %vm225, %v247, 0.0
        %v253 = vadd.f32 %v251, %v252
        %v254 = vsel %vm225, %v248, 0.0
        %v255 = vadd.f32 %v253, %v254
        %v256 = vrot.slane %v255, 4
        %v257 = vadd.f32 %v255, %v256
        %v258 = vrot.slane %v257, 2
        %v259 = vadd.f32 %v257, %v258
        %v260 = vrot.slane %v259, 1
        %v261 = vadd.f32 %v259, %v260
        %v262 = vmul.f32 %v261, %v239
        %v263 = vadd.f32 %v262, 1e-05
        %v264 = vrsqrt.pop %v263
        %v265 = vmul.f32 %v241, %v264
        %v266 = vmul.f32 %v242, %v264
        %v267 = vmul.f32 %v243, %v264
        %v268 = vmul.f32 %v244, %v264
        %v269 = vld [vmem:[%s1] sm:$0xff]
        %v270 = vld [vmem:[%s1 + $0x8] sm:$0xff]
        %v271 = vld [vmem:[%s2] sm:$0xff]
        %v272 = vld [vmem:[%s2 + $0x8] sm:$0xff]
        %274 = vset.pattern.permute.xlu0 0
        %275 = vperm.xlu0 %274, %v271
        %v276 = vpop.permute.xlu0 %275
        %279 = vset.pattern.permute.xlu0 0
        %280 = vperm.xlu0 %279, %v272
        %v281 = vpop.permute.xlu0 %280
        %vm283 = vcmask 261120
        %v285 = vsel %vm283, %v269, 0
        %v288 = vsel %vm283, %v270, 0
        %290 = vmatprep.subr.mxu0 0.0
        %291 = vmatpush1.msra.mxu0 %v265
        %292 = vmatprep.subr.mxu0 0.0
        %293 = vmatpush1.msra.mxu0 %v266
        %294 = vmatprep.subr.mxu0 0.0
        %295 = vmatpush1.msra.mxu0 %v267
        %296 = vmatprep.subr.mxu0 0.0
        %297 = vmatpush1.msra.mxu0 %v268
        %298 = vmatprep.subr.mxu0 0.0
        %299 = vmatpush1.msra.mxu0 0.0
        %300 = vmatprep.subr.mxu0 0.0
        %301 = vmatpush1.msra.mxu0 0.0
        %302 = vmatprep.subr.mxu0 0.0
        %303 = vmatpush1.msra.mxu0 0.0
        %304 = vmatprep.subr.mxu0 0.0
        %305 = vmatpush1.msra.mxu0 0.0
        %306 = vmatprep.subr.mxu0 0.0
        %307 = vmatpush1.msra.mxu0 0.0
        %308 = vmatprep.subr.mxu0 0.0
        %309 = vmatpush1.msra.mxu0 0.0
        %310 = vmatprep.subr.mxu0 0.0
        %311 = vmatpush1.msra.mxu0 0.0
        %312 = vmatprep.subr.mxu0 0.0
        %313 = vmatpush1.msra.mxu0 0.0
        %314 = vmatprep.subr.mxu0 0.0
        %315 = vmatpush1.msra.mxu0 0.0
        %316 = vmatprep.subr.mxu0 0.0
        %317 = vmatpush1.msra.mxu0 0.0
        %318 = vmatprep.subr.mxu0 0.0
        %319 = vmatpush1.msra.mxu0 0.0
        %320 = vmatprep.subr.mxu0 0.0
        %321 = vmatpush1.msra.mxu0 0.0
        %322 = vmatprep.subr.mxu0 0.0
        %323 = vmatpush1.msra.mxu0 0.0
        %324 = vmatprep.subr.mxu0 0.0
        %325 = vmatpush1.msra.mxu0 0.0
        %326 = vmatprep.subr.mxu0 0.0
        %327 = vmatpush1.msra.mxu0 0.0
        %328 = vmatprep.subr.mxu0 0.0
        %329 = vmatpush1.msra.mxu0 0.0
        %330 = vmatprep.subr.mxu0 0.0
        %331 = vmatpush1.msra.mxu0 0.0
        %332 = vmatprep.subr.mxu0 0.0
        %333 = vmatpush1.msra.mxu0 0.0
        %334 = vmatprep.subr.mxu0 0.0
        %335 = vmatpush1.msra.mxu0 0.0
        %336 = vmatprep.subr.mxu0 0.0
        %337 = vmatpush1.msra.mxu0 0.0
        %338 = vmatprep.subr.mxu0 0.0
        %339 = vmatpush1.msra.mxu0 0.0
        %340 = vmatprep.subr.mxu0 0.0
        %341 = vmatpush1.msra.mxu0 0.0
        %342 = vmatprep.subr.mxu0 0.0
        %343 = vmatpush1.msra.mxu0 0.0
        %344 = vmatprep.subr.mxu0 0.0
        %345 = vmatpush1.msra.mxu0 0.0
        %346 = vmatprep.subr.mxu0 0.0
        %347 = vmatpush1.msra.mxu0 0.0
        %348 = vmatprep.subr.mxu0 0.0
        %349 = vmatpush1.msra.mxu0 0.0
        %350 = vmatprep.subr.mxu0 0.0
        %351 = vmatpush1.msra.mxu0 0.0
        %352 = vmatprep.subr.mxu0 0.0
        %353 = vmatpush1.msra.mxu0 0.0
        %354 = vmatprep.mubr.f32.mxu0 0.0
        %355 = vmatmul.mubr.f32.gmra.mrb[0].mxu0 %v285
        %v356 = vpop.f32.mrb[0].mxu0
        %v357 = vadd.f32 %v276, %v356
        %v358 = vpop.f32.mrb[0].mxu0
        %359 = vmatprep.mubr.f32.mxu0 0.0
        %360 = vmatmul.mubr.f32.gmra.mrb[0].mxu0 %v288
        %v361 = vpop.f32.mrb[0].mxu0
        %v362 = vadd.f32 %v281, %v361
        %v363 = vpop.f32.mrb[0].mxu0
        %364 = vdwg.mxu0
        %vm365 = vcmp.ge.f32.partialorder %v357, 0.0
        %vm366 = vcmp.ge.f32.partialorder %v362, 0.0
        %v367 = vld [vmem:[%s3] sm:$0xff]
        %v368 = vld [vmem:[%s3 + $0x8] sm:$0xff]
        %370 = vset.pattern.permute.xlu0 0
        %371 = vperm.xlu0 %370, %v367
        %v372 = vpop.permute.xlu0 %371
        %375 = vset.pattern.permute.xlu0 0
        %376 = vperm.xlu0 %375, %v368
        %v377 = vpop.permute.xlu0 %376
        %v379 = vmul.f32 %v372, %v357
        %v380 = vmul.f32 %v377, %v362
        %v381 = vsel %vm365, %v357, %v379
        %v382 = vsel %vm366, %v362, %v380
        %383 = vst.msk [vmem:[%s212] sm:$0xff] %vm225, %v381
        %384 = vst.msk [vmem:[%s212 + $0x8] sm:$0xff] %vm225, %v382
        %s385 = sand.u32 %s131, 1
        %s386 = scalar_lea.sflag [#allocation3], %s385
        %s387 = sand.u32 %s131, 1
        %s388 = smul.addr %s387, 16
        %s389 = scalar_lea.vmem [#allocation2], %s388
        // Predicated region
        $region37: #{bottleneck_forward.1} parent=35 // pred_check
          %p390 = pneg %p141
        $region38: #{bottleneck_forward.1} parent=35 // pred_check_branch
          %392 = sbr.rel (%p390) target = $region40
        $region39: #{bottleneck_forward.1} parent=35 // pred_region
          %s394 = ssub.s32 256, 256
          %395 = vsyncadd %s386, %s394
          %s396 = smul.addr %s22, 2
          %s397 = sadd.s32 %s23, %s396
          %s398 = smul.addr %s397, 128
          %s399 = scalar_lea.hbm %s4, %s398
          %s400 = sshll.u32 %s389, 4
          %s401 = int_to_ptr.vmem [resolvable:$true] %s400
          %406 = dma.vmem_to_hbm [thread:$0]  %s401, 256, %s399, %s386, 128, 128, 8
        $region40: #{bottleneck_forward.1} parent=35 // pred_fallthru
          _
      $region36: #{bottleneck_forward.1} parent=5 // pred_fallthru
        _
      %p407 = scmp.le.s32.totalorder 2, %s13
      // Predicated region
      $region41: #{bottleneck_forward.1} parent=5 // pred_check
        %p408 = pneg %p407
      $region42: #{bottleneck_forward.1} parent=5 // pred_check_branch
        %410 = sbr.rel (%p408) target = $region44
      $region43: #{bottleneck_forward.1} parent=5 // pred_region
        %s411 = ssub.s32 %s13, 2
        // Predicated region
        $region45: #{bottleneck_forward.1} parent=43 // pred_check
          %p412 = pneg %p147
        $region46: #{bottleneck_forward.1} parent=43 // pred_check_branch
          %414 = sbr.rel (%p412) target = $region48
        $region47: #{bottleneck_forward.1} parent=43 // pred_region
          %s415 = sand.u32 %s132, 1
          %s416 = scalar_lea.sflag [#allocation3], %s415
          %s417 = sand.u32 %s132, 1
          %s418 = smul.addr %s417, 16
          %s419 = scalar_lea.vmem [#allocation2], %s418
          %420 = dma.done %s416, 256
        $region48: #{bottleneck_forward.1} parent=43 // pred_fallthru
          _
      $region44: #{bottleneck_forward.1} parent=5 // pred_fallthru
        _
    $region6: #{bottleneck_forward.1} parent=1 // loop_footer
      %s17 = sadd.s32 1, %s13
    $region7: #{bottleneck_forward.1} parent=1 // loop_footer_branch
      %12 = sbr.rel target = $region3
    $region8: #{bottleneck_forward.1} parent=1 // loop_exit
      _
    %421 = vsyncpa [#allocation3], 1
    %s422 = scalar_lea.sflag [#allocation3], 1
    %423 = vsyncpa %s422, 1

</llo_original>
